<compile_context>
chip_gen: v7x
topology: tpu7x:2x2x1
jax: 0.10.0
libtpu: 0.0.40
codegen_flags: <defaults>
</compile_context>

<pallas_src>
import functools

import jax
import jax.numpy as jnp
from jax.experimental import pallas as pl
from jax.experimental.pallas import tpu as pltpu


# --------------------- fused teacher/student/SSE kernel ----------------------
def _fused_fkd_kernel(x_ref, w_ref, b_ref, o_ref, *, layer_weights):
    """One spatial tile through all layers of BOTH models at once.

    x_ref : (C, t_hw) f32 -- channels on sublanes, spatial pixels on lanes.
    w_ref : (L, 2C, 2C) block-diagonal [[tw^T, 0], [0, sw^T]] weights.
    b_ref : (L, 2C, 1) concatenated [tb; sb] biases (broadcast over lanes).
    o_ref : (8, 128) f32 VMEM -- vreg of partial sums of
            sum_l (l+1)^alpha * (t_l - s_l)^2 over this tile.
    """
    C, t_hw = x_ref.shape
    x = x_ref[...]
    feat = jnp.concatenate([x, x], axis=0)             # [teacher; student], (2C, t_hw)
    acc = jnp.zeros((C, t_hw), jnp.float32)            # weighted (t-s)^2 accumulator

    for l, w_l in enumerate(layer_weights):            # static unroll, weights VMEM-resident
        feat = jnp.maximum(
            jnp.dot(w_ref[l], feat, preferred_element_type=jnp.float32)
            + b_ref[l], 0.0)
        d = feat[:C, :] - feat[C:, :]                  # sublane-aligned static slices
        acc = acc + w_l * (d * d)

    # Fold (C, t_hw) down to a single (8,128) vreg of partial sums using only
    # tile-aligned slices + VPU adds (no full cross-lane XLU reduce in-kernel).
    if C % 8 == 0 and t_hw % 128 == 0:
        r = acc[:8, :]
        for i in range(1, C // 8):
            r = r + acc[8 * i:8 * (i + 1), :]
        p = r[:, :128]
        for j in range(1, t_hw // 128):
            p = p + r[:, 128 * j:128 * (j + 1)]
    else:
        # Fallback for odd shapes: full reduce into lane (0,0).
        p = jnp.zeros((8, 128), jnp.float32).at[0, 0].set(jnp.sum(acc))
    o_ref[...] = p


def fused_layerwise_wsse(x, w_blk, b_blk, *, layer_weights, t_hw):
    """x: (N, C, HW) f32; w_blk: (L, 2C, 2C); b_blk: (L, 2C, 1).
    Returns (N*nhw*8, 128) f32 partial sums of sum_l w_l * (t_l - s_l)^2."""
    N, C, HW = x.shape
    L, C2, _ = w_blk.shape
    assert HW % t_hw == 0, (HW, t_hw)
    nhw = HW // t_hw

    # Advisory cost estimate: L fused (2C,2C)@(2C, N*HW) matmuls + elementwise tail.
    mpix = N * HW
    flops = 2 * L * C2 * C2 * mpix + 6 * L * C * mpix
    bytes_accessed = 4 * (x.size + w_blk.size + b_blk.size + N * nhw * 8 * 128)

    # VMEM guard derived from the tile footprint: double-buffered input tile,
    # double-buffered (grid-invariant) weights/biases, in-kernel intermediates.
    est = (2 * (C * t_hw * 4)
           + 2 * 4 * (w_blk.size + b_blk.size)
           + 6 * C2 * t_hw * 4
           + 2 * 8 * 128 * 4)
    vmem_limit = int(min(32 << 20, max(16 << 20, 4 * est)))   # 32 MiB cap is v7x-safe

    kernel = functools.partial(_fused_fkd_kernel, layer_weights=layer_weights)
    return pl.pallas_call(
        kernel,
        out_shape=jax.ShapeDtypeStruct((N * nhw * 8, 128), jnp.float32),
        grid_spec=pltpu.PrefetchScalarGridSpec(
            num_scalar_prefetch=0,
            grid=(N, nhw),
            in_specs=[
                # Read straight from NCHW: batch squeezed, channels on
                # sublanes, spatial (H*W) on lanes -> 128-lane dense tiles.
                pl.BlockSpec((None, C, t_hw), lambda n, j: (n, 0, j)),
                # Grid-invariant weights / biases (tiny at C=32; default
                # double-buffering is fine -- Buffered(1) not worth the risk).
                pl.BlockSpec((L, C2, C2), lambda n, j: (0, 0, 0)),
                pl.BlockSpec((L, C2, 1), lambda n, j: (0, 0, 0)),
            ],
            # Each grid point owns a unique lane-dense (8,128) output block.
            out_specs=pl.BlockSpec((8, 128), lambda n, j: (n * nhw + j, 0)),
        ),
        compiler_params=pltpu.CompilerParams(
            dimension_semantics=("parallel", "parallel"),
            vmem_limit_bytes=vmem_limit),
        cost_estimate=pl.CostEstimate(flops=int(flops), transcendentals=0,
                                      bytes_accessed=int(bytes_accessed)),
    )(x, w_blk, b_blk)


def _pick_thw(HW, N, max_lanes=2048):
    """Largest multiple-of-128 divisor of HW (capped so double-buffered tiles
    stay small and >=2 grid steps overlap DMA with compute); when N == 1,
    split HW so v7x can shard the parallel grid across both TensorCores."""
    best = None
    for cand in range(128, min(HW, max_lanes) + 1, 128):
        if HW % cand == 0:
            best = cand
    if best is None:
        return HW                      # full-extent lane block (HW not 128-divisible)
    if N == 1 and best == HW and (HW // 2) % 128 == 0:
        best = HW // 2                 # >=2 parallel grid points for v7x megacore
    return best


# ------------------------- parameter preparation -----------------------------
def build_fused_params(teacher_params, student_params):
    """Stack per-layer block-diagonal [[tw^T, 0], [0, sw^T]] weights and the
    concatenated [tb; sb] biases.  Teacher branch is stop-gradient'ed
    (torch.no_grad()).  Call once and reuse: keeps the stacking ops off the
    per-loss-call path."""
    assert len(teacher_params) == len(student_params)
    w_blocks, b_blocks = [], []
    for (tw, tb), (sw, sb) in zip(teacher_params, student_params):
        twT = jax.lax.stop_gradient(tw).T.astype(jnp.float32)       # (C_out, C_in)
        tbT = jax.lax.stop_gradient(tb).reshape(-1, 1).astype(jnp.float32)
        swT = sw.T.astype(jnp.float32)
        sbT = sb.reshape(-1, 1).astype(jnp.float32)
        z = jnp.zeros_like(twT)
        w_blocks.append(jnp.block([[twT, z], [z, swT]]))            # (2C, 2C)
        b_blocks.append(jnp.concatenate([tbT, sbT], axis=0))        # (2C, 1)
    return jnp.stack(w_blocks), jnp.stack(b_blocks)


# ----------------------------- loss (forward) ---------------------------------
def feature_distillation_loss(x_nchw, fused_w, fused_b, alpha, *, t_hw=None):
    """Reproduces FeatureDistillationLoss.forward with synthetic conv models.

    x_nchw : (N, C, H, W) f32 (PyTorch layout, read directly -- no transpose)
    fused_w: (L, 2C, 2C) block-diagonal weights from build_fused_params
    fused_b: (L, 2C, 1) concatenated biases
    """
    N, C, H, W = x_nchw.shape
    HW = H * W
    # Contiguous (N,C,H,W)->(N,C,H*W) merge: metadata-only, no relayout pass.
    x = x_nchw.reshape(N, C, HW).astype(jnp.float32)

    L = fused_w.shape[0]
    layer_weights = tuple(float((i + 1) ** alpha) for i in range(L))
    if t_hw is None:
        t_hw = _pick_thw(HW, N)

    partials = fused_layerwise_wsse(x, fused_w, fused_b,
                                    layer_weights=layer_weights, t_hw=t_hw)
    # sum_l w_l * SSE_l / numel(feature) == sum_l w_l * MSE_l  (MSELoss mean)
    return jnp.sum(partials) / jnp.float32(N * C * HW)


# -------------------------------- main ----------------------------------------
def _make_params(key, num_layers, C):
    params = []
    scale = 0.2 / jnp.sqrt(jnp.float32(C))
    for _ in range(num_layers):
        key, kw, kb = jax.random.split(key, 3)
        w = jax.random.normal(kw, (C, C), jnp.float32) * scale   # (C_in, C_out)
        b = jax.random.normal(kb, (1, C), jnp.float32) * 0.01
        params.append((w, b))
    return params


if __name__ == "__main__":
    N, C, H, W = 2, 32, 16, 16   # H*W = 256 -> lane-dense 128-multiple tiles
    alpha = 0.5

    key = jax.random.PRNGKey(0)
    kx, kt, ks = jax.random.split(key, 3)
    x = jax.random.normal(kx, (N, C, H, W), jnp.float32)
    teacher_params = _make_params(kt, 3, C)
    student_params = _make_params(ks, 3, C)

    fused_w, fused_b = build_fused_params(teacher_params, student_params)
    loss = feature_distillation_loss(x, fused_w, fused_b, alpha)
    loss = jax.block_until_ready(loss)

    # Pure-JAX reference (mirrors the PyTorch forward).
    def ref_loss(x_nchw, tp, sp, a):
        xf = jnp.transpose(x_nchw, (0, 2, 3, 1)).reshape(-1, x_nchw.shape[1])
        t, s, total = xf, xf, 0.0
        for i in range(len(tp)):
            t = jnp.maximum(t @ tp[i][0] + tp[i][1], 0.0)
            s = jnp.maximum(s @ sp[i][0] + sp[i][1], 0.0)
            total = total + jnp.mean((t - s) ** 2) * ((i + 1) ** a)
        return total

    ref = ref_loss(x, teacher_params, student_params, alpha)
    assert jnp.allclose(loss, ref, rtol=1e-5, atol=1e-6), (loss, ref)

    print("KERNEL_OK")
</pallas_src>

<mosaic_0001>
module attributes {stable_mosaic.version = 11 : i64} {
  func.func @_fused_fkd_kernel(%arg0: i32, %arg1: i32, %arg2: memref<1x32x256xf32, #tpu.memory_space<vmem>>, %arg3: memref<3x64x64xf32, #tpu.memory_space<vmem>>, %arg4: memref<3x64x1xf32, #tpu.memory_space<vmem>>, %arg5: memref<8x128xf32, #tpu.memory_space<vmem>>) attributes {dimension_semantics = [#tpu.dimension_semantics<parallel>, #tpu.dimension_semantics<parallel>], iteration_bounds = array<i64: 2, 1>, scalar_prefetch = 0 : i64, scratch_operands = 0 : i64, tpu.core_type = #tpu.core_type<tc>, window_params = [{transform_indices = @transform_0, window_bounds = array<i64: 1, 32, 256>}, {pipeline_mode = #tpu.pipeline_mode<synchronous>, transform_indices = @transform_1, window_bounds = array<i64: 3, 64, 64>}, {pipeline_mode = #tpu.pipeline_mode<synchronous>, transform_indices = @transform_2, window_bounds = array<i64: 3, 64, 1>}, {transform_indices = @transform_3, window_bounds = array<i64: 8, 128>}]} {
    %c0 = arith.constant 0 : index
    %c0_0 = arith.constant 0 : index
    %c0_1 = arith.constant 0 : index
    %0 = vector.load %arg2[%c0, %c0_0, %c0_1] : memref<1x32x256xf32, #tpu.memory_space<vmem>>, vector<1x32x256xf32>
    %1 = vector.shape_cast %0 : vector<1x32x256xf32> to vector<32x256xf32>
    %2 = tpu.concatenate %1, %1 in 0 : vector<32x256xf32>, vector<32x256xf32> -> vector<64x256xf32>
    %cst = arith.constant 0.000000e+00 : f32
    %3 = vector.broadcast %cst : f32 to vector<32x256xf32>
    %c0_2 = arith.constant 0 : index
    %c0_3 = arith.constant 0 : index
    %c0_4 = arith.constant 0 : index
    %4 = vector.load %arg3[%c0_2, %c0_3, %c0_4] : memref<3x64x64xf32, #tpu.memory_space<vmem>>, vector<1x64x64xf32>
    %5 = vector.shape_cast %4 : vector<1x64x64xf32> to vector<64x64xf32>
    %cst_5 = arith.constant dense<0.000000e+00> : vector<64x256xf32>
    %6 = tpu.matmul %5, %2, %cst_5 {dimension_numbers = #tpu.dot_dimension_numbers<[1], [0], [0], [1], [0, 0, 1, 1], [], []>} : vector<64x64xf32>, vector<64x256xf32>, vector<64x256xf32> -> vector<64x256xf32>
    %c0_6 = arith.constant 0 : index
    %c0_7 = arith.constant 0 : index
    %c0_8 = arith.constant 0 : index
    %7 = vector.load %arg4[%c0_6, %c0_7, %c0_8] : memref<3x64x1xf32, #tpu.memory_space<vmem>>, vector<1x64x1xf32>
    %8 = vector.shape_cast %7 : vector<1x64x1xf32> to vector<64x1xf32>
    %9 = vector.broadcast %8 : vector<64x1xf32> to vector<64x256xf32>
    %10 = arith.addf %6, %9 : vector<64x256xf32>
    %cst_9 = arith.constant 0.000000e+00 : f32
    %11 = vector.broadcast %cst_9 : f32 to vector<64x256xf32>
    %12 = arith.maximumf %10, %11 : vector<64x256xf32>
    %13 = vector.extract_strided_slice %12 {offsets = [0, 0], sizes = [32, 256], strides = [1, 1]} : vector<64x256xf32> to vector<32x256xf32>
    %14 = vector.extract_strided_slice %12 {offsets = [32, 0], sizes = [32, 256], strides = [1, 1]} : vector<64x256xf32> to vector<32x256xf32>
    %15 = arith.subf %13, %14 : vector<32x256xf32>
    %16 = arith.mulf %15, %15 : vector<32x256xf32>
    %cst_10 = arith.constant 1.000000e+00 : f32
    %17 = vector.broadcast %cst_10 : f32 to vector<32x256xf32>
    %18 = arith.mulf %17, %16 : vector<32x256xf32>
    %19 = arith.addf %3, %18 : vector<32x256xf32>
    %c1 = arith.constant 1 : index
    %c0_11 = arith.constant 0 : index
    %c0_12 = arith.constant 0 : index
    %20 = vector.load %arg3[%c1, %c0_11, %c0_12] : memref<3x64x64xf32, #tpu.memory_space<vmem>>, vector<1x64x64xf32>
    %21 = vector.shape_cast %20 : vector<1x64x64xf32> to vector<64x64xf32>
    %cst_13 = arith.constant dense<0.000000e+00> : vector<64x256xf32>
    %22 = tpu.matmul %21, %12, %cst_13 {dimension_numbers = #tpu.dot_dimension_numbers<[1], [0], [0], [1], [0, 0, 1, 1], [], []>} : vector<64x64xf32>, vector<64x256xf32>, vector<64x256xf32> -> vector<64x256xf32>
    %c1_14 = arith.constant 1 : index
    %c0_15 = arith.constant 0 : index
    %c0_16 = arith.constant 0 : index
    %23 = vector.load %arg4[%c1_14, %c0_15, %c0_16] : memref<3x64x1xf32, #tpu.memory_space<vmem>>, vector<1x64x1xf32>
    %24 = vector.shape_cast %23 : vector<1x64x1xf32> to vector<64x1xf32>
    %25 = vector.broadcast %24 : vector<64x1xf32> to vector<64x256xf32>
    %26 = arith.addf %22, %25 : vector<64x256xf32>
    %cst_17 = arith.constant 0.000000e+00 : f32
    %27 = vector.broadcast %cst_17 : f32 to vector<64x256xf32>
    %28 = arith.maximumf %26, %27 : vector<64x256xf32>
    %29 = vector.extract_strided_slice %28 {offsets = [0, 0], sizes = [32, 256], strides = [1, 1]} : vector<64x256xf32> to vector<32x256xf32>
    %30 = vector.extract_strided_slice %28 {offsets = [32, 0], sizes = [32, 256], strides = [1, 1]} : vector<64x256xf32> to vector<32x256xf32>
    %31 = arith.subf %29, %30 : vector<32x256xf32>
    %32 = arith.mulf %31, %31 : vector<32x256xf32>
    %cst_18 = arith.constant 1.41421354 : f32
    %33 = vector.broadcast %cst_18 : f32 to vector<32x256xf32>
    %34 = arith.mulf %33, %32 : vector<32x256xf32>
    %35 = arith.addf %19, %34 : vector<32x256xf32>
    %c2 = arith.constant 2 : index
    %c0_19 = arith.constant 0 : index
    %c0_20 = arith.constant 0 : index
    %36 = vector.load %arg3[%c2, %c0_19, %c0_20] : memref<3x64x64xf32, #tpu.memory_space<vmem>>, vector<1x64x64xf32>
    %37 = vector.shape_cast %36 : vector<1x64x64xf32> to vector<64x64xf32>
    %cst_21 = arith.constant dense<0.000000e+00> : vector<64x256xf32>
    %38 = tpu.matmul %37, %28, %cst_21 {dimension_numbers = #tpu.dot_dimension_numbers<[1], [0], [0], [1], [0, 0, 1, 1], [], []>} : vector<64x64xf32>, vector<64x256xf32>, vector<64x256xf32> -> vector<64x256xf32>
    %c2_22 = arith.constant 2 : index
    %c0_23 = arith.constant 0 : index
    %c0_24 = arith.constant 0 : index
    %39 = vector.load %arg4[%c2_22, %c0_23, %c0_24] : memref<3x64x1xf32, #tpu.memory_space<vmem>>, vector<1x64x1xf32>
    %40 = vector.shape_cast %39 : vector<1x64x1xf32> to vector<64x1xf32>
    %41 = vector.broadcast %40 : vector<64x1xf32> to vector<64x256xf32>
    %42 = arith.addf %38, %41 : vector<64x256xf32>
    %cst_25 = arith.constant 0.000000e+00 : f32
    %43 = vector.broadcast %cst_25 : f32 to vector<64x256xf32>
    %44 = arith.maximumf %42, %43 : vector<64x256xf32>
    %45 = vector.extract_strided_slice %44 {offsets = [0, 0], sizes = [32, 256], strides = [1, 1]} : vector<64x256xf32> to vector<32x256xf32>
    %46 = vector.extract_strided_slice %44 {offsets = [32, 0], sizes = [32, 256], strides = [1, 1]} : vector<64x256xf32> to vector<32x256xf32>
    %47 = arith.subf %45, %46 : vector<32x256xf32>
    %48 = arith.mulf %47, %47 : vector<32x256xf32>
    %cst_26 = arith.constant 1.73205078 : f32
    %49 = vector.broadcast %cst_26 : f32 to vector<32x256xf32>
    %50 = arith.mulf %49, %48 : vector<32x256xf32>
    %51 = arith.addf %35, %50 : vector<32x256xf32>
    %52 = vector.extract_strided_slice %51 {offsets = [0, 0], sizes = [8, 256], strides = [1, 1]} : vector<32x256xf32> to vector<8x256xf32>
    %53 = vector.extract_strided_slice %51 {offsets = [8, 0], sizes = [8, 256], strides = [1, 1]} : vector<32x256xf32> to vector<8x256xf32>
    %54 = arith.addf %52, %53 : vector<8x256xf32>
    %55 = vector.extract_strided_slice %51 {offsets = [16, 0], sizes = [8, 256], strides = [1, 1]} : vector<32x256xf32> to vector<8x256xf32>
    %56 = arith.addf %54, %55 : vector<8x256xf32>
    %57 = vector.extract_strided_slice %51 {offsets = [24, 0], sizes = [8, 256], strides = [1, 1]} : vector<32x256xf32> to vector<8x256xf32>
    %58 = arith.addf %56, %57 : vector<8x256xf32>
    %59 = vector.extract_strided_slice %58 {offsets = [0, 0], sizes = [8, 128], strides = [1, 1]} : vector<8x256xf32> to vector<8x128xf32>
    %60 = vector.extract_strided_slice %58 {offsets = [0, 128], sizes = [8, 128], strides = [1, 1]} : vector<8x256xf32> to vector<8x128xf32>
    %61 = arith.addf %59, %60 : vector<8x128xf32>
    %c0_27 = arith.constant 0 : index
    %c0_28 = arith.constant 0 : index
    %62 = vector.load %arg5[%c0_27, %c0_28] : memref<8x128xf32, #tpu.memory_space<vmem>>, vector<8x128xf32>
    tpu.vector_store %arg5[%c0_27, %c0_28], %61 {strides = array<i32>} : memref<8x128xf32, #tpu.memory_space<vmem>>, vector<8x128xf32>,
    return
  }
  func.func @transform_0(%arg0: i32, %arg1: i32) -> (i32, i32, i32) {
    %c0_i32 = arith.constant 0 : i32
    %c0_i32_0 = arith.constant 0 : i32
    return %arg0, %c0_i32, %arg1 : i32, i32, i32
  }
  func.func @transform_1(%arg0: i32, %arg1: i32) -> (i32, i32, i32) {
    %c0_i32 = arith.constant 0 : i32
    %c0_i32_0 = arith.constant 0 : i32
    %c0_i32_1 = arith.constant 0 : i32
    %c0_i32_2 = arith.constant 0 : i32
    return %c0_i32, %c0_i32_0, %c0_i32_1 : i32, i32, i32
  }
  func.func @transform_2(%arg0: i32, %arg1: i32) -> (i32, i32, i32) {
    %c0_i32 = arith.constant 0 : i32
    %c0_i32_0 = arith.constant 0 : i32
    %c0_i32_1 = arith.constant 0 : i32
    %c0_i32_2 = arith.constant 0 : i32
    return %c0_i32, %c0_i32_0, %c0_i32_1 : i32, i32, i32
  }
  func.func @transform_3(%arg0: i32, %arg1: i32) -> (i32, i32) {
    %c1_i32 = arith.constant 1 : i32
    %0 = arith.muli %arg0, %c1_i32 : i32
    %1 = arith.addi %0, %arg1 : i32
    %c0_i32 = arith.constant 0 : i32
    %c0_i32_0 = arith.constant 0 : i32
    return %1, %c0_i32 : i32, i32
  }
}

</mosaic_0001>

<llo_original>
// kernel: tpu_custom_call.1
$region0: #{tpu_custom_call.1}
  #allocation0 [shape = 'u32[]', space=smem, size = 0x4, offset = 0x4, fixed_abs, tag = 'smem constant byte address 0x4 - core index']
  #allocation1 [shape = 'u32[144,128]{1,0:T(1,128)}', space=vmem, size = 0x12000, scoped, tag = 'internal scratch']
  %s0 = inlined_call_operand.hbm [shape: f32[2,32,256], index: 0, kind: input, shape index: {}]
  %s1 = inlined_call_operand.vmem [shape: f32[3,64,64], index: 1, kind: input, shape index: {}]
  %s2 = inlined_call_operand.vmem [shape: f32[3,64,1], index: 2, kind: input, shape index: {}]
  %s3 = inlined_call_operand.hbm [shape: f32[16,128], index: 3, kind: output, shape index: {}]
  %s4 = sld [smem:[#allocation0]]
  $region49: #{tpu_custom_call.1} parent=0
    _
  %s6 = ssub.s32 1, %s4
  %s7 = scalar_select 0, %s6, %s4
  $region1: #{tpu_custom_call.1} parent=0
    #allocation2 [shape = 'u8[65536]{0}', space=vmem, size = 0x10000, scoped, tag = 'input window, operand 0']
    #allocation3 [shape = 's32[2]{0}', space=sflag, size = 0x8, scoped, tag = 'scoped memory for tpu_custom_call.1']
    #allocation4 [shape = 's32[2]{0}', space=sflag, size = 0x8, scoped, tag = 'scoped memory for tpu_custom_call.1']
    #allocation5 [shape = 'u8[8192]{0}', space=vmem, size = 0x2000, scoped, tag = 'output window, operand 0']
    %8 = vsyncpa [#allocation3], 0
    %s9 = scalar_lea.sflag [#allocation3], 1
    %10 = vsyncpa %s9, 0
    %11 = vsyncpa [#allocation4], 0
    %s12 = scalar_lea.sflag [#allocation4], 1
    %13 = vsyncpa %s12, 0
    loop: start=0, step=1, limit=4
    $region2: #{tpu_custom_call.1} parent=1 // loop_pre_header
      _
    $region3: #{tpu_custom_call.1} parent=1 // loop_header
      %s15 = sphi 0, %s19
      %p16 = scmp.ge.s32.totalorder %s15, 4
      %s22 = sphi 0, %s34
      %s23 = sphi 0, %s30
      %s24 = sphi 0, %s22
      %s25 = sphi 0, %s23
      %s26 = sphi 0, %s24
      %s27 = sphi 0, %s25
      %s39 = sphi 0, %s41
      %s42 = sphi 0, %s39
      %s43 = sphi 0, %s42
      %s59 = sphi 0, %s43
      %s63 = sphi 0, %s63
      %s65 = sphi 0, %s63
      %s66 = sphi 0, %s65
      %s80 = sphi 0, %s66
      %s84 = sphi 0, %s84
      %s86 = sphi 0, %s84
      %s87 = sphi 0, %s86
      %s101 = sphi 0, %s87
      %s109 = sphi 0, %s111
      %s112 = sphi 0, %s109
      %s113 = sphi 0, %s112
      %s129 = sphi 0, %s113
    $region4: #{tpu_custom_call.1} parent=1 // loop_header_branch
      %18 = sbr.rel (%p16) target = $region8
    $region5: #{tpu_custom_call.1} parent=1 // loop_body
      %s20 = ssub.s32 %s15, 1
      %s21 = ssub.s32 %s15, 2
      %s28 = sadd.s32 1, %s23
      %p29 = scmp.ge.s32.totalorder %s28, 1
      %s30 = scalar_select %p29, 0, %s28
      %s31 = sadd.s32 1, %s22
      %s32 = scalar_select %p29, %s31, %s22
      %p33 = scmp.ge.s32.totalorder %s32, 2
      %s34 = scalar_select %p33, 0, %s32
      %s35 = ssub.s32 %s22, %s34
      %s36 = ssub.s32 %s23, %s30
      %s37 = sor.u32 %s35, %s36
      %p38 = scmp.eq.s32.totalorder %s37, 0
      %s40 = sadd.s32 %s39, 1
      %s41 = scalar_select %p38, %s39, %s40
      %p44 = pneg %p38
      %p45 = scmp.eq.s32.totalorder %s15, 1
      %p46 = por %p44, %p45
      %p47 = scmp.ne.s32.totalorder %s39, %s42
      %p48 = scmp.eq.s32.totalorder %s15, 0
      %p49 = por %p47, %p48
      %p50 = scmp.ne.s32.totalorder %s39, %s42
      %p51 = scmp.eq.s32.totalorder %s20, 1
      %p52 = por %p50, %p51
      %p53 = scmp.ne.s32.totalorder %s42, %s43
      %p54 = scmp.eq.s32.totalorder %s20, 0
      %p55 = por %p53, %p54
      %p56 = scmp.ne.s32.totalorder %s42, %s43
      %p57 = scmp.eq.s32.totalorder %s21, 1
      %p58 = por %p56, %p57
      %p60 = scmp.ne.s32.totalorder %s43, %s59
      %p61 = scmp.eq.s32.totalorder %s21, 0
      %p62 = por %p60, %p61
      %s64 = sadd.s32 %s63, 1
      %p67 = scmp.eq.s32.totalorder %s15, 1
      %p68 = scmp.ne.s32.totalorder %s63, %s65
      %p69 = scmp.eq.s32.totalorder %s15, 0
      %p70 = por %p68, %p69
      %p71 = scmp.ne.s32.totalorder %s63, %s65
      %p72 = scmp.eq.s32.totalorder %s20, 1
      %p73 = por %p71, %p72
      %p74 = scmp.ne.s32.totalorder %s65, %s66
      %p75 = scmp.eq.s32.totalorder %s20, 0
      %p76 = por %p74, %p75
      %p77 = scmp.ne.s32.totalorder %s65, %s66
      %p78 = scmp.eq.s32.totalorder %s21, 1
      %p79 = por %p77, %p78
      %p81 = scmp.ne.s32.totalorder %s66, %s80
      %p82 = scmp.eq.s32.totalorder %s21, 0
      %p83 = por %p81, %p82
      %s85 = sadd.s32 %s84, 1
      %p88 = scmp.eq.s32.totalorder %s15, 1
      %p89 = scmp.ne.s32.totalorder %s84, %s86
      %p90 = scmp.eq.s32.totalorder %s15, 0
      %p91 = por %p89, %p90
      %p92 = scmp.ne.s32.totalorder %s84, %s86
      %p93 = scmp.eq.s32.totalorder %s20, 1
      %p94 = por %p92, %p93
      %p95 = scmp.ne.s32.totalorder %s86, %s87
      %p96 = scmp.eq.s32.totalorder %s20, 0
      %p97 = por %p95, %p96
      %p98 = scmp.ne.s32.totalorder %s86, %s87
      %p99 = scmp.eq.s32.totalorder %s21, 1
      %p100 = por %p98, %p99
      %p102 = scmp.ne.s32.totalorder %s87, %s101
      %p103 = scmp.eq.s32.totalorder %s21, 0
      %p104 = por %p102, %p103
      %s105 = sadd.s32 %s22, %s23
      %s106 = sadd.s32 %s34, %s30
      %s107 = ssub.s32 %s105, %s106
      %p108 = scmp.eq.s32.totalorder %s107, 0
      %s110 = sadd.s32 %s109, 1
      %s111 = scalar_select %p108, %s109, %s110
      %p114 = pneg %p108
      %p115 = scmp.eq.s32.totalorder %s15, 1
      %p116 = por %p114, %p115
      %p117 = scmp.ne.s32.totalorder %s109, %s112
      %p118 = scmp.eq.s32.totalorder %s15, 0
      %p119 = por %p117, %p118
      %p120 = scmp.ne.s32.totalorder %s109, %s112
      %p121 = scmp.eq.s32.totalorder %s20, 1
      %p122 = por %p120, %p121
      %p123 = scmp.ne.s32.totalorder %s112, %s113
      %p124 = scmp.eq.s32.totalorder %s20, 0
      %p125 = por %p123, %p124
      %p126 = scmp.ne.s32.totalorder %s112, %s113
      %p127 = scmp.eq.s32.totalorder %s21, 1
      %p128 = por %p126, %p127
      %p130 = scmp.ne.s32.totalorder %s113, %s129
      %p131 = scmp.eq.s32.totalorder %s21, 0
      %p132 = por %p130, %p131
      %p133 = scmp.le.s32.totalorder 1, %s15
      %p134 = scmp.lt.s32.totalorder %s15, 3
      %p135 = pnand %p133, %p134
      %p136 = pneg %p135
      // Predicated region
      $region9: #{tpu_custom_call.1} parent=5 // pred_check
        _
      $region10: #{tpu_custom_call.1} parent=5 // pred_check_branch
        %138 = sbr.rel (%p135) target = $region12
      $region11: #{tpu_custom_call.1} parent=5 // pred_region
        %s139 = ssub.s32 %s15, 1
        // Predicated region
        $region13: #{tpu_custom_call.1} parent=11 // pred_check
          %p140 = pneg %p76
        $region14: #{tpu_custom_call.1} parent=11 // pred_check_branch
          %142 = sbr.rel (%p140) target = $region16
        $region15: #{tpu_custom_call.1} parent=11 // pred_region
          _
        $region16: #{tpu_custom_call.1} parent=11 // pred_fallthru
          _
        // Predicated region
        $region17: #{tpu_custom_call.1} parent=11 // pred_check
          %p143 = pneg %p97
        $region18: #{tpu_custom_call.1} parent=11 // pred_check_branch
          %145 = sbr.rel (%p143) target = $region20
        $region19: #{tpu_custom_call.1} parent=11 // pred_region
          _
        $region20: #{tpu_custom_call.1} parent=11 // pred_fallthru
          _
      $region12: #{tpu_custom_call.1} parent=5 // pred_fallthru
        _
      %p146 = scmp.lt.s32.totalorder %s15, 2
      // Predicated region
      $region21: #{tpu_custom_call.1} parent=5 // pred_check
        %p147 = pneg %p146
      $region22: #{tpu_custom_call.1} parent=5 // pred_check_branch
        %149 = sbr.rel (%p147) target = $region24
      $region23: #{tpu_custom_call.1} parent=5 // pred_region
        // Predicated region
        $region25: #{tpu_custom_call.1} parent=23 // pred_check
          %p150 = pneg %p49
        $region26: #{tpu_custom_call.1} parent=23 // pred_check_branch
          %152 = sbr.rel (%p150) target = $region28
        $region27: #{tpu_custom_call.1} parent=23 // pred_region
          %s153 = sand.u32 %s39, 1
          %s154 = scalar_lea.sflag [#allocation3], %s153
          %s155 = sand.u32 %s39, 1
          %s156 = smul.addr %s155, 64
          %s157 = scalar_lea.vmem [#allocation2], %s156
          %s158 = smul.u32 2, %s23
          %s160 = ssub.s32 1024, 1024
          %161 = vsyncadd %s154, %s160
          %s162 = smul.addr %s22, 8
          %s163 = sadd.s32 %s158, %s162
          %s164 = smul.addr %s163, 128
          %s165 = scalar_lea.hbm %s0, %s164
          %s166 = sshll.u32 %s157, 4
          %s167 = int_to_ptr.vmem [resolvable:$true] %s166
          %172 = dma.hbm_to_vmem [thread:$0]  %s165, 1024, %s167, %s154, 256, 256, 16
        $region28: #{tpu_custom_call.1} parent=23 // pred_fallthru
          _
      $region24: #{tpu_custom_call.1} parent=5 // pred_fallthru
        _
      %p173 = scmp.le.s32.totalorder 1, %s15
      %p174 = scmp.lt.s32.totalorder %s15, 3
      %p175 = pnand %p173, %p174
      %p176 = pneg %p175
      // Predicated region
      $region29: #{tpu_custom_call.1} parent=5 // pred_check
        _
      $region30: #{tpu_custom_call.1} parent=5 // pred_check_branch
        %178 = sbr.rel (%p175) target = $region32
      $region31: #{tpu_custom_call.1} parent=5 // pred_region
        %s179 = ssub.s32 %s15, 1
        %s180 = sand.u32 %s42, 1
        %s181 = scalar_lea.sflag [#allocation3], %s180
        %s182 = sand.u32 %s42, 1
        %s183 = smul.addr %s182, 64
        %s184 = scalar_lea.vmem [#allocation2], %s183
        // Predicated region
        $region33: #{tpu_custom_call.1} parent=31 // pred_check
          %p185 = pneg %p55
        $region34: #{tpu_custom_call.1} parent=31 // pred_check_branch
          %187 = sbr.rel (%p185) target = $region36
        $region35: #{tpu_custom_call.1} parent=31 // pred_region
          %188 = dma.done %s181, 1024
        $region36: #{tpu_custom_call.1} parent=31 // pred_fallthru
          _
        %s189 = sand.u32 %s42, 1
        %s190 = scalar_lea.sflag [#allocation3], %s189
        %s191 = sand.u32 %s42, 1
        %s192 = smul.addr %s191, 64
        %s193 = scalar_lea.vmem [#allocation2], %s192
        %p194 = pneg %p55
        %p195 = pneg %p52
        %p196 = pneg %p76
        %p197 = pneg %p73
        %p198 = pneg %p97
        %p199 = pneg %p94
        %p200 = pneg %p125
        %p201 = pneg %p122
        %s202 = sand.u32 %s112, 1
        %s203 = scalar_lea.sflag [#allocation4], %s202
        %s204 = sand.u32 %s112, 1
        %s205 = smul.addr %s204, 8
        %s206 = scalar_lea.vmem [#allocation5], %s205
        %s207 = smul.u32 2, %s25
        %s208 = sadd.s32 %s24, %s25
        %v209 = vld [vmem:[%s184] sm:$0xff]
        %v210 = vld [vmem:[%s184 + $0x8] sm:$0xff]
        %v211 = vld [vmem:[%s184 + $0x10] sm:$0xff]
        %v212 = vld [vmem:[%s184 + $0x18] sm:$0xff]
        %v213 = vld [vmem:[%s184 + $0x20] sm:$0xff]
        %v214 = vld [vmem:[%s184 + $0x28] sm:$0xff]
        %v215 = vld [vmem:[%s184 + $0x30] sm:$0xff]
        %v216 = vld [vmem:[%s184 + $0x38] sm:$0xff]
        %v217 = vld [vmem:[%s1] sm:$0xff]
        %v218 = vld [vmem:[%s1 + $0x8] sm:$0xff]
        %v219 = vld [vmem:[%s1 + $0x10] sm:$0xff]
        %v220 = vld [vmem:[%s1 + $0x18] sm:$0xff]
        %v221 = vld [vmem:[%s1 + $0x20] sm:$0xff]
        %v222 = vld [vmem:[%s1 + $0x28] sm:$0xff]
        %v223 = vld [vmem:[%s1 + $0x30] sm:$0xff]
        %v224 = vld [vmem:[%s1 + $0x38] sm:$0xff]
        %v225 = vld [vmem:[%s2] sm:$0xff]
        %v226 = vld [vmem:[%s2 + $0x8] sm:$0xff]
        %v227 = vld [vmem:[%s2 + $0x10] sm:$0xff]
        %v228 = vld [vmem:[%s2 + $0x18] sm:$0xff]
        %v229 = vld [vmem:[%s2 + $0x20] sm:$0xff]
        %v230 = vld [vmem:[%s2 + $0x28] sm:$0xff]
        %v231 = vld [vmem:[%s2 + $0x30] sm:$0xff]
        %v232 = vld [vmem:[%s2 + $0x38] sm:$0xff]
        %234 = vset.pattern.permute.xlu0 0
        %235 = vperm.xlu0 %234, %v225
        %v236 = vpop.permute.xlu0 %235
        %239 = vset.pattern.permute.xlu0 0
        %240 = vperm.xlu0 %239, %v226
        %v241 = vpop.permute.xlu0 %240
        %244 = vset.pattern.permute.xlu0 0
        %245 = vperm.xlu0 %244, %v227
        %v246 = vpop.permute.xlu0 %245
        %249 = vset.pattern.permute.xlu0 0
        %250 = vperm.xlu0 %249, %v228
        %v251 = vpop.permute.xlu0 %250
        %254 = vset.pattern.permute.xlu0 0
        %255 = vperm.xlu0 %254, %v229
        %v256 = vpop.permute.xlu0 %255
        %259 = vset.pattern.permute.xlu0 0
        %260 = vperm.xlu0 %259, %v230
        %v261 = vpop.permute.xlu0 %260
        %264 = vset.pattern.permute.xlu0 0
        %265 = vperm.xlu0 %264, %v231
        %v266 = vpop.permute.xlu0 %265
        %269 = vset.pattern.permute.xlu0 0
        %270 = vperm.xlu0 %269, %v232
        %v271 = vpop.permute.xlu0 %270
        %vm273 = vcmask 523264
        %v275 = vsel %vm273, %v217, 0
        %v278 = vsel %vm273, %v218, 0
        %v281 = vsel %vm273, %v219, 0
        %v284 = vsel %vm273, %v220, 0
        %v287 = vsel %vm273, %v221, 0
        %v290 = vsel %vm273, %v222, 0
        %v293 = vsel %vm273, %v223, 0
        %v296 = vsel %vm273, %v224, 0
        %298 = vmatprep.subr.mxu0 %v210
        %299 = vmatpush1.msra.mxu0 %v209
        %300 = vmatprep.subr.mxu0 %v212
        %301 = vmatpush1.msra.mxu0 %v211
        %302 = vmatprep.subr.mxu0 %v214
        %303 = vmatpush1.msra.mxu0 %v213
        %304 = vmatprep.subr.mxu0 %v216
        %305 = vmatpush1.msra.mxu0 %v215
        %306 = vmatprep.subr.mxu0 %v210
        %307 = vmatpush1.msra.mxu0 %v209
        %308 = vmatprep.subr.mxu0 %v212
        %309 = vmatpush1.msra.mxu0 %v211
        %310 = vmatprep.subr.mxu0 %v214
        %311 = vmatpush1.msra.mxu0 %v213
        %312 = vmatprep.subr.mxu0 %v216
        %313 = vmatpush1.msra.mxu0 %v215
        %314 = vmatprep.subr.mxu0 0.0
        %315 = vmatpush1.msra.mxu0 0.0
        %316 = vmatprep.subr.mxu0 0.0
        %317 = vmatpush1.msra.mxu0 0.0
        %318 = vmatprep.subr.mxu0 0.0
        %319 = vmatpush1.msra.mxu0 0.0
        %320 = vmatprep.subr.mxu0 0.0
        %321 = vmatpush1.msra.mxu0 0.0
        %322 = vmatprep.subr.mxu0 0.0
        %323 = vmatpush1.msra.mxu0 0.0
        %324 = vmatprep.subr.mxu0 0.0
        %325 = vmatpush1.msra.mxu0 0.0
        %326 = vmatprep.subr.mxu0 0.0
        %327 = vmatpush1.msra.mxu0 0.0
        %328 = vmatprep.subr.mxu0 0.0
        %329 = vmatpush1.msra.mxu0 0.0
        %330 = vmatprep.subr.mxu0 0.0
        %331 = vmatpush1.msra.mxu0 0.0
        %332 = vmatprep.subr.mxu0 0.0
        %333 = vmatpush1.msra.mxu0 0.0
        %334 = vmatprep.subr.mxu0 0.0
        %335 = vmatpush1.msra.mxu0 0.0
        %336 = vmatprep.subr.mxu0 0.0
        %337 = vmatpush1.msra.mxu0 0.0
        %338 = vmatprep.subr.mxu0 0.0
        %339 = vmatpush1.msra.mxu0 0.0
        %340 = vmatprep.subr.mxu0 0.0
        %341 = vmatpush1.msra.mxu0 0.0
        %342 = vmatprep.subr.mxu0 0.0
        %343 = vmatpush1.msra.mxu0 0.0
        %344 = vmatprep.subr.mxu0 0.0
        %345 = vmatpush1.msra.mxu0 0.0
        %346 = vmatprep.subr.mxu0 0.0
        %347 = vmatpush1.msra.mxu0 0.0
        %348 = vmatprep.subr.mxu0 0.0
        %349 = vmatpush1.msra.mxu0 0.0
        %350 = vmatprep.subr.mxu0 0.0
        %351 = vmatpush1.msra.mxu0 0.0
        %352 = vmatprep.subr.mxu0 0.0
        %353 = vmatpush1.msra.mxu0 0.0
        %354 = vmatprep.subr.mxu0 0.0
        %355 = vmatpush1.msra.mxu0 0.0
        %356 = vmatprep.subr.mxu0 0.0
        %357 = vmatpush1.msra.mxu0 0.0
        %358 = vmatprep.subr.mxu0 0.0
        %359 = vmatpush1.msra.mxu0 0.0
        %360 = vmatprep.subr.mxu0 0.0
        %361 = vmatpush1.msra.mxu0 0.0
        %362 = vmatprep.mubr.f32.mxu0 0.0
        %363 = vmatmul.mubr.f32.gmra.mrb[0].mxu0 %v275
        %v364 = vpop.f32.mrb[0].mxu0
        %v365 = vadd.f32 %v236, %v364
        %v366 = vpop.f32.mrb[0].mxu0
        %v367 = vadd.f32 %v236, %v366
        %368 = vmatprep.mubr.f32.mxu0 0.0
        %369 = vmatmul.mubr.f32.gmra.mrb[0].mxu0 %v278
        %v370 = vpop.f32.mrb[0].mxu0
        %v371 = vadd.f32 %v241, %v370
        %v372 = vpop.f32.mrb[0].mxu0
        %v373 = vadd.f32 %v241, %v372
        %374 = vmatprep.mubr.f32.mxu0 0.0
        %375 = vmatmul.mubr.f32.gmra.mrb[0].mxu0 %v281
        %v376 = vpop.f32.mrb[0].mxu0
        %v377 = vadd.f32 %v246, %v376
        %v378 = vpop.f32.mrb[0].mxu0
        %v379 = vadd.f32 %v246, %v378
        %380 = vmatprep.mubr.f32.mxu0 0.0
        %381 = vmatmul.mubr.f32.gmra.mrb[0].mxu0 %v284
        %v382 = vpop.f32.mrb[0].mxu0
        %v383 = vadd.f32 %v251, %v382
        %v384 = vpop.f32.mrb[0].mxu0
        %v385 = vadd.f32 %v251, %v384
        %386 = vmatprep.mubr.f32.mxu0 0.0
        %387 = vmatmul.mubr.f32.gmra.mrb[0].mxu0 %v287
        %v388 = vpop.f32.mrb[0].mxu0
        %v389 = vadd.f32 %v256, %v388
        %v390 = vpop.f32.mrb[0].mxu0
        %v391 = vadd.f32 %v256, %v390
        %392 = vmatprep.mubr.f32.mxu0 0.0
        %393 = vmatmul.mubr.f32.gmra.mrb[0].mxu0 %v290
        %v394 = vpop.f32.mrb[0].mxu0
        %v395 = vadd.f32 %v261, %v394
        %v396 = vpop.f32.mrb[0].mxu0
        %v397 = vadd.f32 %v261, %v396
        %398 = vmatprep.mubr.f32.mxu0 0.0
        %399 = vmatmul.mubr.f32.gmra.mrb[0].mxu0 %v293
        %v400 = vpop.f32.mrb[0].mxu0
        %v401 = vadd.f32 %v266, %v400
        %v402 = vpop.f32.mrb[0].mxu0
        %v403 = vadd.f32 %v266, %v402
        %404 = vmatprep.mubr.f32.mxu0 0.0
        %405 = vmatmul.mubr.f32.gmra.mrb[0].mxu0 %v296
        %v406 = vpop.f32.mrb[0].mxu0
        %v407 = vadd.f32 %v271, %v406
        %v408 = vpop.f32.mrb[0].mxu0
        %v409 = vadd.f32 %v271, %v408
        %410 = vdwg.mxu0
        %v411 = vmax.f32 %v365, 0.0
        %v412 = vmax.f32 %v367, 0.0
        %v413 = vmax.f32 %v371, 0.0
        %v414 = vmax.f32 %v373, 0.0
        %v415 = vmax.f32 %v377, 0.0
        %v416 = vmax.f32 %v379, 0.0
        %v417 = vmax.f32 %v383, 0.0
        %v418 = vmax.f32 %v385, 0.0
        %v419 = vmax.f32 %v389, 0.0
        %v420 = vmax.f32 %v391, 0.0
        %v421 = vmax.f32 %v395, 0.0
        %v422 = vmax.f32 %v397, 0.0
        %v423 = vmax.f32 %v401, 0.0
        %v424 = vmax.f32 %v403, 0.0
        %v425 = vmax.f32 %v407, 0.0
        %v426 = vmax.f32 %v409, 0.0
        %v427 = vsub.f32 %v411, %v419
        %v428 = vsub.f32 %v412, %v420
        %v429 = vsub.f32 %v413, %v421
        %v430 = vsub.f32 %v414, %v422
        %v431 = vsub.f32 %v415, %v423
        %v432 = vsub.f32 %v416, %v424
        %v433 = vsub.f32 %v417, %v425
        %v434 = vsub.f32 %v418, %v426
        %v435 = vmul.f32 %v427, %v427
        %v436 = vmul.f32 %v428, %v428
        %v437 = vmul.f32 %v429, %v429
        %v438 = vmul.f32 %v430, %v430
        %v439 = vmul.f32 %v431, %v431
        %v440 = vmul.f32 %v432, %v432
        %v441 = vmul.f32 %v433, %v433
        %v442 = vmul.f32 %v434, %v434
        %v443 = vadd.f32 %v435, 0.0
        %v444 = vadd.f32 %v436, 0.0
        %v445 = vadd.f32 %v437, 0.0
        %v446 = vadd.f32 %v438, 0.0
        %v447 = vadd.f32 %v439, 0.0
        %v448 = vadd.f32 %v440, 0.0
        %v449 = vadd.f32 %v441, 0.0
        %v450 = vadd.f32 %v442, 0.0
        %s451 = scalar_lea.vmem %s1, 64
        %v452 = vld [vmem:[%s451] sm:$0xff]
        %v453 = vld [vmem:[%s451 + $0x8] sm:$0xff]
        %v454 = vld [vmem:[%s451 + $0x10] sm:$0xff]
        %v455 = vld [vmem:[%s451 + $0x18] sm:$0xff]
        %v456 = vld [vmem:[%s451 + $0x20] sm:$0xff]
        %v457 = vld [vmem:[%s451 + $0x28] sm:$0xff]
        %v458 = vld [vmem:[%s451 + $0x30] sm:$0xff]
        %v459 = vld [vmem:[%s451 + $0x38] sm:$0xff]
        %s460 = scalar_lea.vmem %s2, 64
        %v461 = vld [vmem:[%s460] sm:$0xff]
        %v462 = vld [vmem:[%s460 + $0x8] sm:$0xff]
        %v463 = vld [vmem:[%s460 + $0x10] sm:$0xff]
        %v464 = vld [vmem:[%s460 + $0x18] sm:$0xff]
        %v465 = vld [vmem:[%s460 + $0x20] sm:$0xff]
        %v466 = vld [vmem:[%s460 + $0x28] sm:$0xff]
        %v467 = vld [vmem:[%s460 + $0x30] sm:$0xff]
        %v468 = vld [vmem:[%s460 + $0x38] sm:$0xff]
        %470 = vset.pattern.permute.xlu0 0
        %471 = vperm.xlu0 %470, %v461
        %v472 = vpop.permute.xlu0 %471
        %475 = vset.pattern.permute.xlu0 0
        %476 = vperm.xlu0 %475, %v462
        %v477 = vpop.permute.xlu0 %476
        %480 = vset.pattern.permute.xlu0 0
        %481 = vperm.xlu0 %480, %v463
        %v482 = vpop.permute.xlu0 %481
        %485 = vset.pattern.permute.xlu0 0
        %486 = vperm.xlu0 %485, %v464
        %v487 = vpop.permute.xlu0 %486
        %490 = vset.pattern.permute.xlu0 0
        %491 = vperm.xlu0 %490, %v465
        %v492 = vpop.permute.xlu0 %491
        %495 = vset.pattern.permute.xlu0 0
        %496 = vperm.xlu0 %495, %v466
        %v497 = vpop.permute.xlu0 %496
        %500 = vset.pattern.permute.xlu0 0
        %501 = vperm.xlu0 %500, %v467
        %v502 = vpop.permute.xlu0 %501
        %505 = vset.pattern.permute.xlu0 0
        %506 = vperm.xlu0 %505, %v468
        %v507 = vpop.permute.xlu0 %506
        %v510 = vsel %vm273, %v452, 0
        %v513 = vsel %vm273, %v453, 0
        %v516 = vsel %vm273, %v454, 0
        %v519 = vsel %vm273, %v455, 0
        %v522 = vsel %vm273, %v456, 0
        %v525 = vsel %vm273, %v457, 0
        %v528 = vsel %vm273, %v458, 0
        %v531 = vsel %vm273, %v459, 0
        %533 = vmatprep.subr.mxu0 %v412
        %534 = vmatpush1.msra.mxu0 %v411
        %535 = vmatprep.subr.mxu0 %v414
        %536 = vmatpush1.msra.mxu0 %v413
        %537 = vmatprep.subr.mxu0 %v416
        %538 = vmatpush1.msra.mxu0 %v415
        %539 = vmatprep.subr.mxu0 %v418
        %540 = vmatpush1.msra.mxu0 %v417
        %541 = vmatprep.subr.mxu0 %v420
        %542 = vmatpush1.msra.mxu0 %v419
        %543 = vmatprep.subr.mxu0 %v422
        %544 = vmatpush1.msra.mxu0 %v421
        %545 = vmatprep.subr.mxu0 %v424
        %546 = vmatpush1.msra.mxu0 %v423
        %547 = vmatprep.subr.mxu0 %v426
        %548 = vmatpush1.msra.mxu0 %v425
        %549 = vmatprep.subr.mxu0 0.0
        %550 = vmatpush1.msra.mxu0 0.0
        %551 = vmatprep.subr.mxu0 0.0
        %552 = vmatpush1.msra.mxu0 0.0
        %553 = vmatprep.subr.mxu0 0.0
        %554 = vmatpush1.msra.mxu0 0.0
        %555 = vmatprep.subr.mxu0 0.0
        %556 = vmatpush1.msra.mxu0 0.0
        %557 = vmatprep.subr.mxu0 0.0
        %558 = vmatpush1.msra.mxu0 0.0
        %559 = vmatprep.subr.mxu0 0.0
        %560 = vmatpush1.msra.mxu0 0.0
        %561 = vmatprep.subr.mxu0 0.0
        %562 = vmatpush1.msra.mxu0 0.0
        %563 = vmatprep.subr.mxu0 0.0
        %564 = vmatpush1.msra.mxu0 0.0
        %565 = vmatprep.subr.mxu0 0.0
        %566 = vmatpush1.msra.mxu0 0.0
        %567 = vmatprep.subr.mxu0 0.0
        %568 = vmatpush1.msra.mxu0 0.0
        %569 = vmatprep.subr.mxu0 0.0
        %570 = vmatpush1.msra.mxu0 0.0
        %571 = vmatprep.subr.mxu0 0.0
        %572 = vmatpush1.msra.mxu0 0.0
        %573 = vmatprep.subr.mxu0 0.0
        %574 = vmatpush1.msra.mxu0 0.0
        %575 = vmatprep.subr.mxu0 0.0
        %576 = vmatpush1.msra.mxu0 0.0
        %577 = vmatprep.subr.mxu0 0.0
        %578 = vmatpush1.msra.mxu0 0.0
        %579 = vmatprep.subr.mxu0 0.0
        %580 = vmatpush1.msra.mxu0 0.0
        %581 = vmatprep.subr.mxu0 0.0
        %582 = vmatpush1.msra.mxu0 0.0
        %583 = vmatprep.subr.mxu0 0.0
        %584 = vmatpush1.msra.mxu0 0.0
        %585 = vmatprep.subr.mxu0 0.0
        %586 = vmatpush1.msra.mxu0 0.0
        %587 = vmatprep.subr.mxu0 0.0
        %588 = vmatpush1.msra.mxu0 0.0
        %589 = vmatprep.subr.mxu0 0.0
        %590 = vmatpush1.msra.mxu0 0.0
        %591 = vmatprep.subr.mxu0 0.0
        %592 = vmatpush1.msra.mxu0 0.0
        %593 = vmatprep.subr.mxu0 0.0
        %594 = vmatpush1.msra.mxu0 0.0
        %595 = vmatprep.subr.mxu0 0.0
        %596 = vmatpush1.msra.mxu0 0.0
        %597 = vmatprep.mubr.f32.mxu0 0.0
        %598 = vmatmul.mubr.f32.gmra.mrb[0].mxu0 %v510
        %v599 = vpop.f32.mrb[0].mxu0
        %v600 = vadd.f32 %v472, %v599
        %v601 = vpop.f32.mrb[0].mxu0
        %v602 = vadd.f32 %v472, %v601
        %603 = vmatprep.mubr.f32.mxu0 0.0
        %604 = vmatmul.mubr.f32.gmra.mrb[0].mxu0 %v513
        %v605 = vpop.f32.mrb[0].mxu0
        %v606 = vadd.f32 %v477, %v605
        %v607 = vpop.f32.mrb[0].mxu0
        %v608 = vadd.f32 %v477, %v607
        %609 = vmatprep.mubr.f32.mxu0 0.0
        %610 = vmatmul.mubr.f32.gmra.mrb[0].mxu0 %v516
        %v611 = vpop.f32.mrb[0].mxu0
        %v612 = vadd.f32 %v482, %v611
        %v613 = vpop.f32.mrb[0].mxu0
        %v614 = vadd.f32 %v482, %v613
        %615 = vmatprep.mubr.f32.mxu0 0.0
        %616 = vmatmul.mubr.f32.gmra.mrb[0].mxu0 %v519
        %v617 = vpop.f32.mrb[0].mxu0
        %v618 = vadd.f32 %v487, %v617
        %v619 = vpop.f32.mrb[0].mxu0
        %v620 = vadd.f32 %v487, %v619
        %621 = vmatprep.mubr.f32.mxu0 0.0
        %622 = vmatmul.mubr.f32.gmra.mrb[0].mxu0 %v522
        %v623 = vpop.f32.mrb[0].mxu0
        %v624 = vadd.f32 %v492, %v623
        %v625 = vpop.f32.mrb[0].mxu0
        %v626 = vadd.f32 %v492, %v625
        %627 = vmatprep.mubr.f32.mxu0 0.0
        %628 = vmatmul.mubr.f32.gmra.mrb[0].mxu0 %v525
        %v629 = vpop.f32.mrb[0].mxu0
        %v630 = vadd.f32 %v497, %v629
        %v631 = vpop.f32.mrb[0].mxu0
        %v632 = vadd.f32 %v497, %v631
        %633 = vmatprep.mubr.f32.mxu0 0.0
        %634 = vmatmul.mubr.f32.gmra.mrb[0].mxu0 %v528
        %v635 = vpop.f32.mrb[0].mxu0
        %v636 = vadd.f32 %v502, %v635
        %v637 = vpop.f32.mrb[0].mxu0
        %v638 = vadd.f32 %v502, %v637
        %639 = vmatprep.mubr.f32.mxu0 0.0
        %640 = vmatmul.mubr.f32.gmra.mrb[0].mxu0 %v531
        %v641 = vpop.f32.mrb[0].mxu0
        %v642 = vadd.f32 %v507, %v641
        %v643 = vpop.f32.mrb[0].mxu0
        %v644 = vadd.f32 %v507, %v643
        %645 = vdwg.mxu0
        %v646 = vmax.f32 %v600, 0.0
        %v647 = vmax.f32 %v602, 0.0
        %v648 = vmax.f32 %v606, 0.0
        %v649 = vmax.f32 %v608, 0.0
        %v650 = vmax.f32 %v612, 0.0
        %v651 = vmax.f32 %v614, 0.0
        %v652 = vmax.f32 %v618, 0.0
        %v653 = vmax.f32 %v620, 0.0
        %v654 = vmax.f32 %v624, 0.0
        %v655 = vmax.f32 %v626, 0.0
        %v656 = vmax.f32 %v630, 0.0
        %v657 = vmax.f32 %v632, 0.0
        %v658 = vmax.f32 %v636, 0.0
        %v659 = vmax.f32 %v638, 0.0
        %v660 = vmax.f32 %v642, 0.0
        %v661 = vmax.f32 %v644, 0.0
        %v662 = vsub.f32 %v646, %v654
        %v663 = vsub.f32 %v647, %v655
        %v664 = vsub.f32 %v648, %v656
        %v665 = vsub.f32 %v649, %v657
        %v666 = vsub.f32 %v650, %v658
        %v667 = vsub.f32 %v651, %v659
        %v668 = vsub.f32 %v652, %v660
        %v669 = vsub.f32 %v653, %v661
        %v670 = vmul.f32 %v662, %v662
        %v671 = vmul.f32 %v663, %v663
        %v672 = vmul.f32 %v664, %v664
        %v673 = vmul.f32 %v665, %v665
        %v674 = vmul.f32 %v666, %v666
        %v675 = vmul.f32 %v667, %v667
        %v676 = vmul.f32 %v668, %v668
        %v677 = vmul.f32 %v669, %v669
        %v678 = vmul.f32 %v670, 1.4142135
        %v679 = vmul.f32 %v671, 1.4142135
        %v680 = vmul.f32 %v672, 1.4142135
        %v681 = vmul.f32 %v673, 1.4142135
        %v682 = vmul.f32 %v674, 1.4142135
        %v683 = vmul.f32 %v675, 1.4142135
        %v684 = vmul.f32 %v676, 1.4142135
        %v685 = vmul.f32 %v677, 1.4142135
        %v686 = vadd.f32 %v443, %v678
        %v687 = vadd.f32 %v444, %v679
        %v688 = vadd.f32 %v445, %v680
        %v689 = vadd.f32 %v446, %v681
        %v690 = vadd.f32 %v447, %v682
        %v691 = vadd.f32 %v448, %v683
        %v692 = vadd.f32 %v449, %v684
        %v693 = vadd.f32 %v450, %v685
        %s694 = scalar_lea.vmem %s1, 128
        %v695 = vld [vmem:[%s694] sm:$0xff]
        %v696 = vld [vmem:[%s694 + $0x8] sm:$0xff]
        %v697 = vld [vmem:[%s694 + $0x10] sm:$0xff]
        %v698 = vld [vmem:[%s694 + $0x18] sm:$0xff]
        %v699 = vld [vmem:[%s694 + $0x20] sm:$0xff]
        %v700 = vld [vmem:[%s694 + $0x28] sm:$0xff]
        %v701 = vld [vmem:[%s694 + $0x30] sm:$0xff]
        %v702 = vld [vmem:[%s694 + $0x38] sm:$0xff]
        %s703 = scalar_lea.vmem %s2, 128
        %v704 = vld [vmem:[%s703] sm:$0xff]
        %v705 = vld [vmem:[%s703 + $0x8] sm:$0xff]
        %v706 = vld [vmem:[%s703 + $0x10] sm:$0xff]
        %v707 = vld [vmem:[%s703 + $0x18] sm:$0xff]
        %v708 = vld [vmem:[%s703 + $0x20] sm:$0xff]
        %v709 = vld [vmem:[%s703 + $0x28] sm:$0xff]
        %v710 = vld [vmem:[%s703 + $0x30] sm:$0xff]
        %v711 = vld [vmem:[%s703 + $0x38] sm:$0xff]
        %713 = vset.pattern.permute.xlu0 0
        %714 = vperm.xlu0 %713, %v704
        %v715 = vpop.permute.xlu0 %714
        %718 = vset.pattern.permute.xlu0 0
        %719 = vperm.xlu0 %718, %v705
        %v720 = vpop.permute.xlu0 %719
        %723 = vset.pattern.permute.xlu0 0
        %724 = vperm.xlu0 %723, %v706
        %v725 = vpop.permute.xlu0 %724
        %728 = vset.pattern.permute.xlu0 0
        %729 = vperm.xlu0 %728, %v707
        %v730 = vpop.permute.xlu0 %729
        %733 = vset.pattern.permute.xlu0 0
        %734 = vperm.xlu0 %733, %v708
        %v735 = vpop.permute.xlu0 %734
        %738 = vset.pattern.permute.xlu0 0
        %739 = vperm.xlu0 %738, %v709
        %v740 = vpop.permute.xlu0 %739
        %743 = vset.pattern.permute.xlu0 0
        %744 = vperm.xlu0 %743, %v710
        %v745 = vpop.permute.xlu0 %744
        %748 = vset.pattern.permute.xlu0 0
        %749 = vperm.xlu0 %748, %v711
        %v750 = vpop.permute.xlu0 %749
        %v753 = vsel %vm273, %v695, 0
        %v756 = vsel %vm273, %v696, 0
        %v759 = vsel %vm273, %v697, 0
        %v762 = vsel %vm273, %v698, 0
        %v765 = vsel %vm273, %v699, 0
        %v768 = vsel %vm273, %v700, 0
        %v771 = vsel %vm273, %v701, 0
        %v774 = vsel %vm273, %v702, 0
        %776 = vmatprep.subr.mxu0 %v647
        %777 = vmatpush1.msra.mxu0 %v646
        %778 = vmatprep.subr.mxu0 %v649
        %779 = vmatpush1.msra.mxu0 %v648
        %780 = vmatprep.subr.mxu0 %v651
        %781 = vmatpush1.msra.mxu0 %v650
        %782 = vmatprep.subr.mxu0 %v653
        %783 = vmatpush1.msra.mxu0 %v652
        %784 = vmatprep.subr.mxu0 %v655
        %785 = vmatpush1.msra.mxu0 %v654
        %786 = vmatprep.subr.mxu0 %v657
        %787 = vmatpush1.msra.mxu0 %v656
        %788 = vmatprep.subr.mxu0 %v659
        %789 = vmatpush1.msra.mxu0 %v658
        %790 = vmatprep.subr.mxu0 %v661
        %791 = vmatpush1.msra.mxu0 %v660
        %792 = vmatprep.subr.mxu0 0.0
        %793 = vmatpush1.msra.mxu0 0.0
        %794 = vmatprep.subr.mxu0 0.0
        %795 = vmatpush1.msra.mxu0 0.0
        %796 = vmatprep.subr.mxu0 0.0
        %797 = vmatpush1.msra.mxu0 0.0
        %798 = vmatprep.subr.mxu0 0.0
        %799 = vmatpush1.msra.mxu0 0.0
        %800 = vmatprep.subr.mxu0 0.0
        %801 = vmatpush1.msra.mxu0 0.0
        %802 = vmatprep.subr.mxu0 0.0
        %803 = vmatpush1.msra.mxu0 0.0
        %804 = vmatprep.subr.mxu0 0.0
        %805 = vmatpush1.msra.mxu0 0.0
        %806 = vmatprep.subr.mxu0 0.0
        %807 = vmatpush1.msra.mxu0 0.0
        %808 = vmatprep.subr.mxu0 0.0
        %809 = vmatpush1.msra.mxu0 0.0
        %810 = vmatprep.subr.mxu0 0.0
        %811 = vmatpush1.msra.mxu0 0.0
        %812 = vmatprep.subr.mxu0 0.0
        %813 = vmatpush1.msra.mxu0 0.0
        %814 = vmatprep.subr.mxu0 0.0
        %815 = vmatpush1.msra.mxu0 0.0
        %816 = vmatprep.subr.mxu0 0.0
        %817 = vmatpush1.msra.mxu0 0.0
        %818 = vmatprep.subr.mxu0 0.0
        %819 = vmatpush1.msra.mxu0 0.0
        %820 = vmatprep.subr.mxu0 0.0
        %821 = vmatpush1.msra.mxu0 0.0
        %822 = vmatprep.subr.mxu0 0.0
        %823 = vmatpush1.msra.mxu0 0.0
        %824 = vmatprep.subr.mxu0 0.0
        %825 = vmatpush1.msra.mxu0 0.0
        %826 = vmatprep.subr.mxu0 0.0
        %827 = vmatpush1.msra.mxu0 0.0
        %828 = vmatprep.subr.mxu0 0.0
        %829 = vmatpush1.msra.mxu0 0.0
        %830 = vmatprep.subr.mxu0 0.0
        %831 = vmatpush1.msra.mxu0 0.0
        %832 = vmatprep.subr.mxu0 0.0
        %833 = vmatpush1.msra.mxu0 0.0
        %834 = vmatprep.subr.mxu0 0.0
        %835 = vmatpush1.msra.mxu0 0.0
        %836 = vmatprep.subr.mxu0 0.0
        %837 = vmatpush1.msra.mxu0 0.0
        %838 = vmatprep.subr.mxu0 0.0
        %839 = vmatpush1.msra.mxu0 0.0
        %840 = vmatprep.mubr.f32.mxu0 0.0
        %841 = vmatmul.mubr.f32.gmra.mrb[0].mxu0 %v753
        %v842 = vpop.f32.mrb[0].mxu0
        %v843 = vadd.f32 %v715, %v842
        %v844 = vpop.f32.mrb[0].mxu0
        %v845 = vadd.f32 %v715, %v844
        %846 = vmatprep.mubr.f32.mxu0 0.0
        %847 = vmatmul.mubr.f32.gmra.mrb[0].mxu0 %v756
        %v848 = vpop.f32.mrb[0].mxu0
        %v849 = vadd.f32 %v720, %v848
        %v850 = vpop.f32.mrb[0].mxu0
        %v851 = vadd.f32 %v720, %v850
        %852 = vmatprep.mubr.f32.mxu0 0.0
        %853 = vmatmul.mubr.f32.gmra.mrb[0].mxu0 %v759
        %v854 = vpop.f32.mrb[0].mxu0
        %v855 = vadd.f32 %v725, %v854
        %v856 = vpop.f32.mrb[0].mxu0
        %v857 = vadd.f32 %v725, %v856
        %858 = vmatprep.mubr.f32.mxu0 0.0
        %859 = vmatmul.mubr.f32.gmra.mrb[0].mxu0 %v762
        %v860 = vpop.f32.mrb[0].mxu0
        %v861 = vadd.f32 %v730, %v860
        %v862 = vpop.f32.mrb[0].mxu0
        %v863 = vadd.f32 %v730, %v862
        %864 = vmatprep.mubr.f32.mxu0 0.0
        %865 = vmatmul.mubr.f32.gmra.mrb[0].mxu0 %v765
        %v866 = vpop.f32.mrb[0].mxu0
        %v867 = vadd.f32 %v735, %v866
        %v868 = vpop.f32.mrb[0].mxu0
        %v869 = vadd.f32 %v735, %v868
        %870 = vmatprep.mubr.f32.mxu0 0.0
        %871 = vmatmul.mubr.f32.gmra.mrb[0].mxu0 %v768
        %v872 = vpop.f32.mrb[0].mxu0
        %v873 = vadd.f32 %v740, %v872
        %v874 = vpop.f32.mrb[0].mxu0
        %v875 = vadd.f32 %v740, %v874
        %876 = vmatprep.mubr.f32.mxu0 0.0
        %877 = vmatmul.mubr.f32.gmra.mrb[0].mxu0 %v771
        %v878 = vpop.f32.mrb[0].mxu0
        %v879 = vadd.f32 %v745, %v878
        %v880 = vpop.f32.mrb[0].mxu0
        %v881 = vadd.f32 %v745, %v880
        %882 = vmatprep.mubr.f32.mxu0 0.0
        %883 = vmatmul.mubr.f32.gmra.mrb[0].mxu0 %v774
        %v884 = vpop.f32.mrb[0].mxu0
        %v885 = vadd.f32 %v750, %v884
        %v886 = vpop.f32.mrb[0].mxu0
        %v887 = vadd.f32 %v750, %v886
        %888 = vdwg.mxu0
        %v889 = vmax.f32 %v843, 0.0
        %v890 = vmax.f32 %v845, 0.0
        %v891 = vmax.f32 %v849, 0.0
        %v892 = vmax.f32 %v851, 0.0
        %v893 = vmax.f32 %v855, 0.0
        %v894 = vmax.f32 %v857, 0.0
        %v895 = vmax.f32 %v861, 0.0
        %v896 = vmax.f32 %v863, 0.0
        %v897 = vmax.f32 %v867, 0.0
        %v898 = vmax.f32 %v869, 0.0
        %v899 = vmax.f32 %v873, 0.0
        %v900 = vmax.f32 %v875, 0.0
        %v901 = vmax.f32 %v879, 0.0
        %v902 = vmax.f32 %v881, 0.0
        %v903 = vmax.f32 %v885, 0.0
        %v904 = vmax.f32 %v887, 0.0
        %v905 = vsub.f32 %v889, %v897
        %v906 = vsub.f32 %v890, %v898
        %v907 = vsub.f32 %v891, %v899
        %v908 = vsub.f32 %v892, %v900
        %v909 = vsub.f32 %v893, %v901
        %v910 = vsub.f32 %v894, %v902
        %v911 = vsub.f32 %v895, %v903
        %v912 = vsub.f32 %v896, %v904
        %v913 = vmul.f32 %v905, %v905
        %v914 = vmul.f32 %v906, %v906
        %v915 = vmul.f32 %v907, %v907
        %v916 = vmul.f32 %v908, %v908
        %v917 = vmul.f32 %v909, %v909
        %v918 = vmul.f32 %v910, %v910
        %v919 = vmul.f32 %v911, %v911
        %v920 = vmul.f32 %v912, %v912
        %v921 = vmul.f32 %v913, 1.7320508
        %v922 = vmul.f32 %v914, 1.7320508
        %v923 = vmul.f32 %v915, 1.7320508
        %v924 = vmul.f32 %v916, 1.7320508
        %v925 = vmul.f32 %v917, 1.7320508
        %v926 = vmul.f32 %v918, 1.7320508
        %v927 = vmul.f32 %v919, 1.7320508
        %v928 = vmul.f32 %v920, 1.7320508
        %v929 = vadd.f32 %v686, %v921
        %v930 = vadd.f32 %v687, %v922
        %v931 = vadd.f32 %v688, %v923
        %v932 = vadd.f32 %v689, %v924
        %v933 = vadd.f32 %v690, %v925
        %v934 = vadd.f32 %v691, %v926
        %v935 = vadd.f32 %v692, %v927
        %v936 = vadd.f32 %v693, %v928
        %v937 = vadd.f32 %v929, %v931
        %v938 = vadd.f32 %v930, %v932
        %v939 = vadd.f32 %v937, %v933
        %v940 = vadd.f32 %v938, %v934
        %v941 = vadd.f32 %v939, %v935
        %v942 = vadd.f32 %v940, %v936
        %v943 = vadd.f32 %v941, %v942
        %944 = vst [vmem:[%s206] sm:$0xff] %v943
        %s945 = sand.u32 %s112, 1
        %s946 = scalar_lea.sflag [#allocation4], %s945
        %s947 = sand.u32 %s112, 1
        %s948 = smul.addr %s947, 8
        %s949 = scalar_lea.vmem [#allocation5], %s948
        // Predicated region
        $region37: #{tpu_custom_call.1} parent=31 // pred_check
          %p950 = pneg %p122
        $region38: #{tpu_custom_call.1} parent=31 // pred_check_branch
          %952 = sbr.rel (%p950) target = $region40
        $region39: #{tpu_custom_call.1} parent=31 // pred_region
          %s953 = sadd.s32 %s24, %s25
          %s955 = ssub.s32 128, 128
          %956 = vsyncadd %s946, %s955
          %s957 = smul.addr %s953, 128
          %s958 = scalar_lea.hbm %s3, %s957
          %s960 = sshll.u32 %s949, 4
          %s961 = int_to_ptr.vmem [resolvable:$true] %s960
          %963 = dma.vmem_to_hbm [thread:$0]  %s961, 128, %s958, %s946
        $region40: #{tpu_custom_call.1} parent=31 // pred_fallthru
          _
      $region32: #{tpu_custom_call.1} parent=5 // pred_fallthru
        _
      %p964 = scmp.le.s32.totalorder 2, %s15
      // Predicated region
      $region41: #{tpu_custom_call.1} parent=5 // pred_check
        %p965 = pneg %p964
      $region42: #{tpu_custom_call.1} parent=5 // pred_check_branch
        %967 = sbr.rel (%p965) target = $region44
      $region43: #{tpu_custom_call.1} parent=5 // pred_region
        %s968 = ssub.s32 %s15, 2
        // Predicated region
        $region45: #{tpu_custom_call.1} parent=43 // pred_check
          %p969 = pneg %p128
        $region46: #{tpu_custom_call.1} parent=43 // pred_check_branch
          %971 = sbr.rel (%p969) target = $region48
        $region47: #{tpu_custom_call.1} parent=43 // pred_region
          %s972 = sand.u32 %s113, 1
          %s973 = scalar_lea.sflag [#allocation4], %s972
          %s974 = sand.u32 %s113, 1
          %s975 = smul.addr %s974, 8
          %s976 = scalar_lea.vmem [#allocation5], %s975
          %977 = dma.done %s973, 128
        $region48: #{tpu_custom_call.1} parent=43 // pred_fallthru
          _
      $region44: #{tpu_custom_call.1} parent=5 // pred_fallthru
        _
    $region6: #{tpu_custom_call.1} parent=1 // loop_footer
      %s19 = sadd.s32 1, %s15
    $region7: #{tpu_custom_call.1} parent=1 // loop_footer_branch
      %14 = sbr.rel target = $region3
    $region8: #{tpu_custom_call.1} parent=1 // loop_exit
      _
    %978 = vsyncpa [#allocation3], 1
    %s979 = scalar_lea.sflag [#allocation3], 1
    %980 = vsyncpa %s979, 1
    %981 = vsyncpa [#allocation4], 1
    %s982 = scalar_lea.sflag [#allocation4], 1
    %983 = vsyncpa %s982, 1

</llo_original>
